<compile_context>
chip_gen: v7x
topology: tpu7x:2x2x1
jax: 0.10.0
libtpu: 0.0.40
codegen_flags: <defaults>
</compile_context>

<pallas_src>
import functools

import numpy as np
import jax
import jax.numpy as jnp
from jax.experimental import pallas as pl
from jax.experimental.pallas import tpu as pltpu


# ----------------------------------------------------------------------------
# Pallas kernel: out[r, v] = scores[r, v] + bias[v]   (accumulate in f32)
# ----------------------------------------------------------------------------
def _causal_bias_add_kernel(scores_ref, bias_ref, out_ref):
    # scores_ref: (BLOCK_R, BLOCK_V) in the score dtype
    # bias_ref  : (1, BLOCK_V) float32 -- broadcasts over rows, no reshape
    # out_ref   : (BLOCK_R, BLOCK_V)
    acc = scores_ref[...].astype(jnp.float32) + bias_ref[...]
    out_ref[...] = acc.astype(out_ref.dtype)


def _round_down(x: int, m: int) -> int:
    return (x // m) * m


@functools.lru_cache(maxsize=1)
def _tpu_budgets():
    """(max bytes per block buffer, vmem_limit_bytes), generation-aware."""
    max_block_bytes = 4 * 1024 * 1024      # good for v5e/v6e (128 MiB VMEM)
    vmem_limit = 32 * 1024 * 1024
    try:
        vmem_capacity = int(pltpu.get_tpu_info().vmem_capacity_bytes)
        if vmem_capacity <= 64 * 1024 * 1024:
            # v7x-class part: 64 MiB VMEM/TC but 3.2 TB/s HBM -> bigger tiles
            # amortize the per-step pipeline overhead.
            max_block_bytes = 6 * 1024 * 1024
            vmem_limit = 44 * 1024 * 1024
    except Exception:
        pass  # conservative defaults are valid on every generation
    return max_block_bytes, vmem_limit


def _choose_blocks(rows: int, vocab: int, itemsize: int, max_block_bytes: int):
    """Pick lane-dense (row, vocab) tiles that fit VMEM on all TPU gens."""
    # Vocab tile: always a multiple of 128; Pallas masks the partial last
    # tile.  Only a sub-128 vocab uses the full-dim block (which sidesteps
    # the (8,128) BlockSpec rule).
    if vocab >= 128:
        block_v = _round_down(min(vocab, 2048), 128)
    else:
        block_v = vocab
    # Row tile: multiple of 8, one buffer <= max_block_bytes, at most 1024.
    block_r = max(8, min(1024, max_block_bytes // (block_v * itemsize)))
    block_r = _round_down(block_r, 8)
    if block_r >= rows:
        if rows <= 8:
            block_r = rows  # single full-dim block (allowed even if not %8)
        else:
            # Force >= 2 row tiles so the leading "parallel" axis can shard
            # across both TensorCores on v7x.
            block_r = max(8, _round_down(rows // 2, 8))
    return block_r, block_v


@functools.partial(jax.jit, donate_argnums=(0,))
def causal_bias_add(attention_scores: jax.Array, bias_f32: jax.Array) -> jax.Array:
    """attention_scores: [..., V] (DONATED / consumed); bias_f32: [V] float32.

    Returns attention_scores + bias (broadcast over all leading axes).
    """
    orig_shape = attention_scores.shape
    V = int(orig_shape[-1])
    rows = 1
    for d in orig_shape[:-1]:
        rows *= int(d)
    rows = max(rows, 1)
    dtype = attention_scores.dtype
    itemsize = jnp.dtype(dtype).itemsize

    scores2d = attention_scores.reshape(rows, V)
    bias2d = bias_f32.reshape(1, V).astype(jnp.float32)

    max_block_bytes, vmem_limit = _tpu_budgets()
    block_r, block_v = _choose_blocks(rows, V, itemsize, max_block_bytes)
    grid = (pl.cdiv(rows, block_r), pl.cdiv(V, block_v))

    out2d = pl.pallas_call(
        _causal_bias_add_kernel,
        out_shape=jax.ShapeDtypeStruct((rows, V), dtype),
        grid=grid,
        in_specs=[
            pl.BlockSpec((block_r, block_v), lambda r, v: (r, v)),
            pl.BlockSpec((1, block_v), lambda r, v: (0, v)),
        ],
        out_specs=pl.BlockSpec((block_r, block_v), lambda r, v: (r, v)),
        # In-place add: the donated (reshaped) scores buffer backs the output.
        input_output_aliases={0: 0},
        compiler_params=pltpu.CompilerParams(
            dimension_semantics=("parallel", "parallel"),
            vmem_limit_bytes=vmem_limit,
        ),
        cost_estimate=pl.CostEstimate(
            flops=rows * V,
            transcendentals=0,
            bytes_accessed=2 * rows * V * itemsize + V * 4,
        ),
    )(scores2d, bias2d)

    return out2d.reshape(orig_shape)


# ----------------------------------------------------------------------------
# Host-side glue: synthetic deterministic tokenizer + rule application.
# ----------------------------------------------------------------------------
class ToyTokenizer:
    """Deterministic word-level tokenizer mapping words into [0, vocab_size)."""

    def __init__(self, vocab_size: int):
        self.vocab_size = vocab_size

    def encode(self, text: str, add_special_tokens: bool = False):
        ids = []
        for word in text.strip().split():
            h = 0
            for ch in word:
                h = (h * 131 + ord(ch)) % self.vocab_size
            ids.append(h)
        return ids


class CausalAttentionLayerPallas:
    """JAX/Pallas port of causaltorch CausalAttentionLayer.

    NOTE: the attention_scores argument is donated (consumed) by the kernel,
    matching the in-place `+=` semantics of the PyTorch original.
    """

    def __init__(self, causal_rules: dict):
        self.rules = causal_rules
        self.tokenizer = None  # must be set by parent, same contract as torch
        self._bias_cache = {}  # (rules, input_text, V) -> device f32 bias

    def _bias_for(self, input_text: str, vocab_size: int) -> jax.Array:
        rules_key = tuple(sorted(
            (str(c), str(info["effect"]), float(info["strength"]))
            for c, info in self.rules.items()
        ))
        key = (rules_key, input_text, int(vocab_size))
        cached = self._bias_cache.get(key)
        if cached is not None:
            return cached
        # Accumulate per-vocab bias on host in float32 (one device transfer,
        # no per-token jnp scatter dispatches, no bf16 accumulation loss).
        bias_np = np.zeros((vocab_size,), dtype=np.float32)
        for cause, effect_info in self.rules.items():
            if cause in input_text:
                effect_ids = self.tokenizer.encode(
                    effect_info["effect"], add_special_tokens=False
                )
                for token_id in effect_ids:
                    bias_np[token_id] += float(effect_info["strength"])
        bias = jnp.asarray(bias_np)
        self._bias_cache[key] = bias
        return bias

    def __call__(self, attention_scores: jax.Array, input_text: str) -> jax.Array:
        if self.tokenizer is None:
            raise ValueError(
                "Tokenizer not found. Please set self.tokenizer in the parent model."
            )
        bias = self._bias_for(input_text, attention_scores.shape[-1])
        # Hot path (broadcast add over the full score tensor) runs in Pallas.
        return causal_bias_add(attention_scores, bias)


# ----------------------------------------------------------------------------
# Demo / self-check
# ----------------------------------------------------------------------------
if __name__ == "__main__":
    # Multi-tile but small shapes: rows = B*S = 1024 -> >=2 row tiles; vocab
    # lane-aligned to 128 -> unmasked stores.
    B, S, V = 4, 256, 256  # batch, seq, vocab

    key = jax.random.PRNGKey(0)
    attention_scores = jax.random.normal(key, (B, S, V), dtype=jnp.float32)

    causal_rules = {
        "rain": {"effect": "wet ground puddles", "strength": 2.5},
        "fire": {"effect": "smoke ash", "strength": 1.0},
        "snow": {"effect": "cold ice", "strength": 3.0},  # cause absent -> no-op
    }
    input_text = "heavy rain started and a small fire burned nearby"

    layer = CausalAttentionLayerPallas(causal_rules)
    layer.tokenizer = ToyTokenizer(vocab_size=V)

    # Pure-JAX reference, computed BEFORE the kernel call: attention_scores is
    # donated to the kernel (in-place add) and is invalid afterwards.
    ref_bias = np.zeros((V,), dtype=np.float32)
    for cause, info in causal_rules.items():
        if cause in input_text:
            for tid in layer.tokenizer.encode(info["effect"]):
                ref_bias[tid] += info["strength"]
    ref = attention_scores + jnp.asarray(ref_bias)[None, None, :]
    ref = jax.block_until_ready(ref)

    out = layer(attention_scores, input_text)
    out = jax.block_until_ready(out)

    assert out.shape == (B, S, V)
    assert out.dtype == jnp.float32
    assert jnp.allclose(out, ref, atol=1e-6), "mismatch vs reference"

    print("KERNEL_OK")
</pallas_src>

<mosaic_0001>
module attributes {stable_mosaic.version = 11 : i64} {
  func.func @_causal_bias_add_kernel(%arg0: i32, %arg1: i32, %arg2: memref<512x256xf32, #tpu.memory_space<vmem>>, %arg3: memref<1x256xf32, #tpu.memory_space<vmem>>, %arg4: memref<512x256xf32, #tpu.memory_space<vmem>>) attributes {dimension_semantics = [#tpu.dimension_semantics<parallel>, #tpu.dimension_semantics<parallel>], iteration_bounds = array<i64: 2, 1>, scalar_prefetch = 0 : i64, scratch_operands = 0 : i64, tpu.core_type = #tpu.core_type<tc>, window_params = [{transform_indices = @transform_0, window_bounds = array<i64: 512, 256>}, {transform_indices = @transform_1, window_bounds = array<i64: 1, 256>}, {transform_indices = @transform_2, window_bounds = array<i64: 512, 256>}]} {
    %c0 = arith.constant 0 : index
    %c0_0 = arith.constant 0 : index
    %0 = vector.load %arg2[%c0, %c0_0] : memref<512x256xf32, #tpu.memory_space<vmem>>, vector<512x256xf32>
    %c0_1 = arith.constant 0 : index
    %c0_2 = arith.constant 0 : index
    %1 = vector.load %arg3[%c0_1, %c0_2] : memref<1x256xf32, #tpu.memory_space<vmem>>, vector<1x256xf32>
    %2 = vector.broadcast %1 : vector<1x256xf32> to vector<512x256xf32>
    %3 = arith.addf %0, %2 : vector<512x256xf32>
    %c0_3 = arith.constant 0 : index
    %c0_4 = arith.constant 0 : index
    %4 = vector.load %arg4[%c0_3, %c0_4] : memref<512x256xf32, #tpu.memory_space<vmem>>, vector<512x256xf32>
    tpu.vector_store %arg4[%c0_3, %c0_4], %3 {strides = array<i32>} : memref<512x256xf32, #tpu.memory_space<vmem>>, vector<512x256xf32>,
    return
  }
  func.func @transform_0(%arg0: i32, %arg1: i32) -> (i32, i32) {
    %c0_i32 = arith.constant 0 : i32
    return %arg0, %arg1 : i32, i32
  }
  func.func @transform_1(%arg0: i32, %arg1: i32) -> (i32, i32) {
    %c0_i32 = arith.constant 0 : i32
    %c0_i32_0 = arith.constant 0 : i32
    return %c0_i32, %arg1 : i32, i32
  }
  func.func @transform_2(%arg0: i32, %arg1: i32) -> (i32, i32) {
    %c0_i32 = arith.constant 0 : i32
    return %arg0, %arg1 : i32, i32
  }
}

</mosaic_0001>

<llo_original>
// kernel: causal_bias_add.1
$region0: #{causal_bias_add.1}
  #allocation0 [shape = 'u32[]', space=smem, size = 0x4, offset = 0x4, fixed_abs, tag = 'smem constant byte address 0x4 - core index']
  #allocation1 [shape = 'u32[144,128]{1,0:T(1,128)}', space=vmem, size = 0x12000, scoped, tag = 'internal scratch']
  %s0 = inlined_call_operand.hbm [shape: f32[1024,256], index: 0, kind: input, shape index: {}, may-alias: {0,2}]
  %s1 = inlined_call_operand.vmem [shape: f32[1,256], index: 1, kind: input, shape index: {}]
  %s2 = inlined_call_operand.hbm [shape: f32[1024,256], index: 2, kind: output, shape index: {}, may-alias: {0,2}]
  %s3 = sld [smem:[#allocation0]]
  $region45: #{causal_bias_add.1} parent=0
    _
  %s5 = ssub.s32 1, %s3
  %s6 = scalar_select 0, %s5, %s3
  $region1: #{causal_bias_add.1} parent=0
    #allocation2 [shape = 'u8[1048576]{0}', space=vmem, size = 0x100000, scoped, tag = 'input window, operand 0']
    #allocation3 [shape = 's32[2]{0}', space=sflag, size = 0x8, scoped, tag = 'scoped memory for causal_bias_add.1']
    #allocation4 [shape = 's32[2]{0}', space=sflag, size = 0x8, scoped, tag = 'scoped memory for causal_bias_add.1']
    #allocation5 [shape = 'u8[1048576]{0}', space=vmem, size = 0x100000, scoped, tag = 'output window, operand 0']
    %7 = vsyncpa [#allocation3], 0
    %s8 = scalar_lea.sflag [#allocation3], 1
    %9 = vsyncpa %s8, 0
    %10 = vsyncpa [#allocation4], 0
    %s11 = scalar_lea.sflag [#allocation4], 1
    %12 = vsyncpa %s11, 0
    loop: start=0, step=1, limit=4
    $region2: #{causal_bias_add.1} parent=1 // loop_pre_header
      _
    $region3: #{causal_bias_add.1} parent=1 // loop_header
      %s14 = sphi 0, %s18
      %p15 = scmp.ge.s32.totalorder %s14, 4
      %s21 = sphi 0, %s33
      %s22 = sphi 0, %s29
      %s23 = sphi 0, %s21
      %s24 = sphi 0, %s22
      %s25 = sphi 0, %s23
      %s26 = sphi 0, %s24
      %s38 = sphi 0, %s40
      %s41 = sphi 0, %s38
      %s42 = sphi 0, %s41
      %s58 = sphi 0, %s42
      %s64 = sphi 0, %s66
      %s67 = sphi 0, %s64
      %s68 = sphi 0, %s67
      %s84 = sphi 0, %s68
      %s92 = sphi 0, %s94
      %s95 = sphi 0, %s92
      %s96 = sphi 0, %s95
      %s112 = sphi 0, %s96
    $region4: #{causal_bias_add.1} parent=1 // loop_header_branch
      %17 = sbr.rel (%p15) target = $region8
    $region5: #{causal_bias_add.1} parent=1 // loop_body
      %s19 = ssub.s32 %s14, 1
      %s20 = ssub.s32 %s14, 2
      %s27 = sadd.s32 1, %s22
      %p28 = scmp.ge.s32.totalorder %s27, 1
      %s29 = scalar_select %p28, 0, %s27
      %s30 = sadd.s32 1, %s21
      %s31 = scalar_select %p28, %s30, %s21
      %p32 = scmp.ge.s32.totalorder %s31, 2
      %s33 = scalar_select %p32, 0, %s31
      %s34 = ssub.s32 %s21, %s33
      %s35 = ssub.s32 %s22, %s29
      %s36 = sor.u32 %s34, %s35
      %p37 = scmp.eq.s32.totalorder %s36, 0
      %s39 = sadd.s32 %s38, 1
      %s40 = scalar_select %p37, %s38, %s39
      %p43 = pneg %p37
      %p44 = scmp.eq.s32.totalorder %s14, 1
      %p45 = por %p43, %p44
      %p46 = scmp.ne.s32.totalorder %s38, %s41
      %p47 = scmp.eq.s32.totalorder %s14, 0
      %p48 = por %p46, %p47
      %p49 = scmp.ne.s32.totalorder %s38, %s41
      %p50 = scmp.eq.s32.totalorder %s19, 1
      %p51 = por %p49, %p50
      %p52 = scmp.ne.s32.totalorder %s41, %s42
      %p53 = scmp.eq.s32.totalorder %s19, 0
      %p54 = por %p52, %p53
      %p55 = scmp.ne.s32.totalorder %s41, %s42
      %p56 = scmp.eq.s32.totalorder %s20, 1
      %p57 = por %p55, %p56
      %p59 = scmp.ne.s32.totalorder %s42, %s58
      %p60 = scmp.eq.s32.totalorder %s20, 0
      %p61 = por %p59, %p60
      %s62 = ssub.s32 %s22, %s29
      %p63 = scmp.eq.s32.totalorder %s62, 0
      %s65 = sadd.s32 %s64, 1
      %s66 = scalar_select %p63, %s64, %s65
      %p69 = pneg %p63
      %p70 = scmp.eq.s32.totalorder %s14, 1
      %p71 = por %p69, %p70
      %p72 = scmp.ne.s32.totalorder %s64, %s67
      %p73 = scmp.eq.s32.totalorder %s14, 0
      %p74 = por %p72, %p73
      %p75 = scmp.ne.s32.totalorder %s64, %s67
      %p76 = scmp.eq.s32.totalorder %s19, 1
      %p77 = por %p75, %p76
      %p78 = scmp.ne.s32.totalorder %s67, %s68
      %p79 = scmp.eq.s32.totalorder %s19, 0
      %p80 = por %p78, %p79
      %p81 = scmp.ne.s32.totalorder %s67, %s68
      %p82 = scmp.eq.s32.totalorder %s20, 1
      %p83 = por %p81, %p82
      %p85 = scmp.ne.s32.totalorder %s68, %s84
      %p86 = scmp.eq.s32.totalorder %s20, 0
      %p87 = por %p85, %p86
      %s88 = ssub.s32 %s21, %s33
      %s89 = ssub.s32 %s22, %s29
      %s90 = sor.u32 %s88, %s89
      %p91 = scmp.eq.s32.totalorder %s90, 0
      %s93 = sadd.s32 %s92, 1
      %s94 = scalar_select %p91, %s92, %s93
      %p97 = pneg %p91
      %p98 = scmp.eq.s32.totalorder %s14, 1
      %p99 = por %p97, %p98
      %p100 = scmp.ne.s32.totalorder %s92, %s95
      %p101 = scmp.eq.s32.totalorder %s14, 0
      %p102 = por %p100, %p101
      %p103 = scmp.ne.s32.totalorder %s92, %s95
      %p104 = scmp.eq.s32.totalorder %s19, 1
      %p105 = por %p103, %p104
      %p106 = scmp.ne.s32.totalorder %s95, %s96
      %p107 = scmp.eq.s32.totalorder %s19, 0
      %p108 = por %p106, %p107
      %p109 = scmp.ne.s32.totalorder %s95, %s96
      %p110 = scmp.eq.s32.totalorder %s20, 1
      %p111 = por %p109, %p110
      %p113 = scmp.ne.s32.totalorder %s96, %s112
      %p114 = scmp.eq.s32.totalorder %s20, 0
      %p115 = por %p113, %p114
      %p116 = scmp.le.s32.totalorder 1, %s14
      %p117 = scmp.lt.s32.totalorder %s14, 3
      %p118 = pnand %p116, %p117
      %p119 = pneg %p118
      // Predicated region
      $region9: #{causal_bias_add.1} parent=5 // pred_check
        _
      $region10: #{causal_bias_add.1} parent=5 // pred_check_branch
        %121 = sbr.rel (%p118) target = $region12
      $region11: #{causal_bias_add.1} parent=5 // pred_region
        %s122 = ssub.s32 %s14, 1
        // Predicated region
        $region13: #{causal_bias_add.1} parent=11 // pred_check
          %p123 = pneg %p80
        $region14: #{causal_bias_add.1} parent=11 // pred_check_branch
          %125 = sbr.rel (%p123) target = $region16
        $region15: #{causal_bias_add.1} parent=11 // pred_region
          %s126 = smul.u32 2, %s24
          %p127 = scmp.lt.s32.totalorder %s126, 1
          %s128 = scalar_select %p127, %s126, 1
          %s129 = scalar_lea.vmem %s1, %s128
          %s130 = smul.u32 2, %s24
        $region16: #{causal_bias_add.1} parent=11 // pred_fallthru
          _
      $region12: #{causal_bias_add.1} parent=5 // pred_fallthru
        _
      %p131 = scmp.lt.s32.totalorder %s14, 2
      // Predicated region
      $region17: #{causal_bias_add.1} parent=5 // pred_check
        %p132 = pneg %p131
      $region18: #{causal_bias_add.1} parent=5 // pred_check_branch
        %134 = sbr.rel (%p132) target = $region20
      $region19: #{causal_bias_add.1} parent=5 // pred_region
        // Predicated region
        $region21: #{causal_bias_add.1} parent=19 // pred_check
          %p135 = pneg %p48
        $region22: #{causal_bias_add.1} parent=19 // pred_check_branch
          %137 = sbr.rel (%p135) target = $region24
        $region23: #{causal_bias_add.1} parent=19 // pred_region
          %s138 = sand.u32 %s38, 1
          %s139 = scalar_lea.sflag [#allocation3], %s138
          %s140 = sand.u32 %s38, 1
          %s141 = smul.addr %s140, 1024
          %s142 = scalar_lea.vmem [#allocation2], %s141
          %s143 = smul.u32 64, %s21
          %s144 = smul.u32 2, %s22
          %s146 = ssub.s32 16384, 16384
          %147 = vsyncadd %s139, %s146
          %s148 = smul.addr %s143, 2
          %s149 = sadd.s32 %s144, %s148
          %s150 = smul.addr %s149, 128
          %s151 = scalar_lea.hbm %s0, %s150
          %s152 = sshll.u32 %s142, 4
          %s153 = int_to_ptr.vmem [resolvable:$true] %s152
          %158 = dma.hbm_to_vmem [thread:$0]  %s151, 16384, %s153, %s139, 256, 256, 16
        $region24: #{causal_bias_add.1} parent=19 // pred_fallthru
          _
      $region20: #{causal_bias_add.1} parent=5 // pred_fallthru
        _
      %p159 = scmp.le.s32.totalorder 1, %s14
      %p160 = scmp.lt.s32.totalorder %s14, 3
      %p161 = pnand %p159, %p160
      %p162 = pneg %p161
      // Predicated region
      $region25: #{causal_bias_add.1} parent=5 // pred_check
        _
      $region26: #{causal_bias_add.1} parent=5 // pred_check_branch
        %164 = sbr.rel (%p161) target = $region28
      $region27: #{causal_bias_add.1} parent=5 // pred_region
        %s165 = ssub.s32 %s14, 1
        %s166 = sand.u32 %s41, 1
        %s167 = scalar_lea.sflag [#allocation3], %s166
        %s168 = sand.u32 %s41, 1
        %s169 = smul.addr %s168, 1024
        %s170 = scalar_lea.vmem [#allocation2], %s169
        // Predicated region
        $region29: #{causal_bias_add.1} parent=27 // pred_check
          %p171 = pneg %p54
        $region30: #{causal_bias_add.1} parent=27 // pred_check_branch
          %173 = sbr.rel (%p171) target = $region32
        $region31: #{causal_bias_add.1} parent=27 // pred_region
          %174 = dma.done %s167, 16384
        $region32: #{causal_bias_add.1} parent=27 // pred_fallthru
          _
        %s175 = sand.u32 %s41, 1
        %s176 = scalar_lea.sflag [#allocation3], %s175
        %s177 = sand.u32 %s41, 1
        %s178 = smul.addr %s177, 1024
        %s179 = scalar_lea.vmem [#allocation2], %s178
        %p180 = pneg %p54
        %p181 = pneg %p51
        %s182 = smul.u32 2, %s24
        %p183 = scmp.lt.s32.totalorder %s182, 1
        %s184 = scalar_select %p183, %s182, 1
        %s185 = scalar_lea.vmem %s1, %s184
        %p186 = pneg %p80
        %p187 = pneg %p77
        %p188 = pneg %p108
        %p189 = pneg %p105
        %s190 = sand.u32 %s95, 1
        %s191 = scalar_lea.sflag [#allocation4], %s190
        %s192 = sand.u32 %s95, 1
        %s193 = smul.addr %s192, 1024
        %s194 = scalar_lea.vmem [#allocation5], %s193
        %s195 = smul.u32 64, %s23
        %s196 = smul.u32 2, %s24
        %s197 = smul.u32 2, %s24
        %p198 = scmp.lt.s32.totalorder %s197, 1
        %s199 = scalar_select %p198, %s197, 1
        %s200 = scalar_lea.vmem %s1, %s199
        %s201 = smul.u32 2, %s24
        %s202 = smul.u32 64, %s23
        %s203 = smul.u32 2, %s24
        %v204 = vld [vmem:[%s170] sm:$0xff]
        %v205 = vld [vmem:[%s170 + $0x8] sm:$0xff]
        %v206 = vld [vmem:[%s170 + $0x10] sm:$0xff]
        %v207 = vld [vmem:[%s170 + $0x18] sm:$0xff]
        %v208 = vld [vmem:[%s170 + $0x20] sm:$0xff]
        %v209 = vld [vmem:[%s170 + $0x28] sm:$0xff]
        %v210 = vld [vmem:[%s170 + $0x30] sm:$0xff]
        %v211 = vld [vmem:[%s170 + $0x38] sm:$0xff]
        %v212 = vld [vmem:[%s170 + $0x40] sm:$0xff]
        %v213 = vld [vmem:[%s170 + $0x48] sm:$0xff]
        %v214 = vld [vmem:[%s170 + $0x50] sm:$0xff]
        %v215 = vld [vmem:[%s170 + $0x58] sm:$0xff]
        %v216 = vld [vmem:[%s170 + $0x60] sm:$0xff]
        %v217 = vld [vmem:[%s170 + $0x68] sm:$0xff]
        %v218 = vld [vmem:[%s170 + $0x70] sm:$0xff]
        %v219 = vld [vmem:[%s170 + $0x78] sm:$0xff]
        %v220 = vld [vmem:[%s170 + $0x80] sm:$0xff]
        %v221 = vld [vmem:[%s170 + $0x88] sm:$0xff]
        %v222 = vld [vmem:[%s170 + $0x90] sm:$0xff]
        %v223 = vld [vmem:[%s170 + $0x98] sm:$0xff]
        %v224 = vld [vmem:[%s170 + $0xa0] sm:$0xff]
        %v225 = vld [vmem:[%s170 + $0xa8] sm:$0xff]
        %v226 = vld [vmem:[%s170 + $0xb0] sm:$0xff]
        %v227 = vld [vmem:[%s170 + $0xb8] sm:$0xff]
        %v228 = vld [vmem:[%s170 + $0xc0] sm:$0xff]
        %v229 = vld [vmem:[%s170 + $0xc8] sm:$0xff]
        %v230 = vld [vmem:[%s170 + $0xd0] sm:$0xff]
        %v231 = vld [vmem:[%s170 + $0xd8] sm:$0xff]
        %v232 = vld [vmem:[%s170 + $0xe0] sm:$0xff]
        %v233 = vld [vmem:[%s170 + $0xe8] sm:$0xff]
        %v234 = vld [vmem:[%s170 + $0xf0] sm:$0xff]
        %v235 = vld [vmem:[%s170 + $0xf8] sm:$0xff]
        %v236 = vld [vmem:[%s170 + $0x100] sm:$0xff]
        %v237 = vld [vmem:[%s170 + $0x108] sm:$0xff]
        %v238 = vld [vmem:[%s170 + $0x110] sm:$0xff]
        %v239 = vld [vmem:[%s170 + $0x118] sm:$0xff]
        %v240 = vld [vmem:[%s170 + $0x120] sm:$0xff]
        %v241 = vld [vmem:[%s170 + $0x128] sm:$0xff]
        %v242 = vld [vmem:[%s170 + $0x130] sm:$0xff]
        %v243 = vld [vmem:[%s170 + $0x138] sm:$0xff]
        %v244 = vld [vmem:[%s170 + $0x140] sm:$0xff]
        %v245 = vld [vmem:[%s170 + $0x148] sm:$0xff]
        %v246 = vld [vmem:[%s170 + $0x150] sm:$0xff]
        %v247 = vld [vmem:[%s170 + $0x158] sm:$0xff]
        %v248 = vld [vmem:[%s170 + $0x160] sm:$0xff]
        %v249 = vld [vmem:[%s170 + $0x168] sm:$0xff]
        %v250 = vld [vmem:[%s170 + $0x170] sm:$0xff]
        %v251 = vld [vmem:[%s170 + $0x178] sm:$0xff]
        %v252 = vld [vmem:[%s170 + $0x180] sm:$0xff]
        %v253 = vld [vmem:[%s170 + $0x188] sm:$0xff]
        %v254 = vld [vmem:[%s170 + $0x190] sm:$0xff]
        %v255 = vld [vmem:[%s170 + $0x198] sm:$0xff]
        %v256 = vld [vmem:[%s170 + $0x1a0] sm:$0xff]
        %v257 = vld [vmem:[%s170 + $0x1a8] sm:$0xff]
        %v258 = vld [vmem:[%s170 + $0x1b0] sm:$0xff]
        %v259 = vld [vmem:[%s170 + $0x1b8] sm:$0xff]
        %v260 = vld [vmem:[%s170 + $0x1c0] sm:$0xff]
        %v261 = vld [vmem:[%s170 + $0x1c8] sm:$0xff]
        %v262 = vld [vmem:[%s170 + $0x1d0] sm:$0xff]
        %v263 = vld [vmem:[%s170 + $0x1d8] sm:$0xff]
        %v264 = vld [vmem:[%s170 + $0x1e0] sm:$0xff]
        %v265 = vld [vmem:[%s170 + $0x1e8] sm:$0xff]
        %v266 = vld [vmem:[%s170 + $0x1f0] sm:$0xff]
        %v267 = vld [vmem:[%s170 + $0x1f8] sm:$0xff]
        %v268 = vld [vmem:[%s170 + $0x200] sm:$0xff]
        %v269 = vld [vmem:[%s170 + $0x208] sm:$0xff]
        %v270 = vld [vmem:[%s170 + $0x210] sm:$0xff]
        %v271 = vld [vmem:[%s170 + $0x218] sm:$0xff]
        %v272 = vld [vmem:[%s170 + $0x220] sm:$0xff]
        %v273 = vld [vmem:[%s170 + $0x228] sm:$0xff]
        %v274 = vld [vmem:[%s170 + $0x230] sm:$0xff]
        %v275 = vld [vmem:[%s170 + $0x238] sm:$0xff]
        %v276 = vld [vmem:[%s170 + $0x240] sm:$0xff]
        %v277 = vld [vmem:[%s170 + $0x248] sm:$0xff]
        %v278 = vld [vmem:[%s170 + $0x250] sm:$0xff]
        %v279 = vld [vmem:[%s170 + $0x258] sm:$0xff]
        %v280 = vld [vmem:[%s170 + $0x260] sm:$0xff]
        %v281 = vld [vmem:[%s170 + $0x268] sm:$0xff]
        %v282 = vld [vmem:[%s170 + $0x270] sm:$0xff]
        %v283 = vld [vmem:[%s170 + $0x278] sm:$0xff]
        %v284 = vld [vmem:[%s170 + $0x280] sm:$0xff]
        %v285 = vld [vmem:[%s170 + $0x288] sm:$0xff]
        %v286 = vld [vmem:[%s170 + $0x290] sm:$0xff]
        %v287 = vld [vmem:[%s170 + $0x298] sm:$0xff]
        %v288 = vld [vmem:[%s170 + $0x2a0] sm:$0xff]
        %v289 = vld [vmem:[%s170 + $0x2a8] sm:$0xff]
        %v290 = vld [vmem:[%s170 + $0x2b0] sm:$0xff]
        %v291 = vld [vmem:[%s170 + $0x2b8] sm:$0xff]
        %v292 = vld [vmem:[%s170 + $0x2c0] sm:$0xff]
        %v293 = vld [vmem:[%s170 + $0x2c8] sm:$0xff]
        %v294 = vld [vmem:[%s170 + $0x2d0] sm:$0xff]
        %v295 = vld [vmem:[%s170 + $0x2d8] sm:$0xff]
        %v296 = vld [vmem:[%s170 + $0x2e0] sm:$0xff]
        %v297 = vld [vmem:[%s170 + $0x2e8] sm:$0xff]
        %v298 = vld [vmem:[%s170 + $0x2f0] sm:$0xff]
        %v299 = vld [vmem:[%s170 + $0x2f8] sm:$0xff]
        %v300 = vld [vmem:[%s170 + $0x300] sm:$0xff]
        %v301 = vld [vmem:[%s170 + $0x308] sm:$0xff]
        %v302 = vld [vmem:[%s170 + $0x310] sm:$0xff]
        %v303 = vld [vmem:[%s170 + $0x318] sm:$0xff]
        %v304 = vld [vmem:[%s170 + $0x320] sm:$0xff]
        %v305 = vld [vmem:[%s170 + $0x328] sm:$0xff]
        %v306 = vld [vmem:[%s170 + $0x330] sm:$0xff]
        %v307 = vld [vmem:[%s170 + $0x338] sm:$0xff]
        %v308 = vld [vmem:[%s170 + $0x340] sm:$0xff]
        %v309 = vld [vmem:[%s170 + $0x348] sm:$0xff]
        %v310 = vld [vmem:[%s170 + $0x350] sm:$0xff]
        %v311 = vld [vmem:[%s170 + $0x358] sm:$0xff]
        %v312 = vld [vmem:[%s170 + $0x360] sm:$0xff]
        %v313 = vld [vmem:[%s170 + $0x368] sm:$0xff]
        %v314 = vld [vmem:[%s170 + $0x370] sm:$0xff]
        %v315 = vld [vmem:[%s170 + $0x378] sm:$0xff]
        %v316 = vld [vmem:[%s170 + $0x380] sm:$0xff]
        %v317 = vld [vmem:[%s170 + $0x388] sm:$0xff]
        %v318 = vld [vmem:[%s170 + $0x390] sm:$0xff]
        %v319 = vld [vmem:[%s170 + $0x398] sm:$0xff]
        %v320 = vld [vmem:[%s170 + $0x3a0] sm:$0xff]
        %v321 = vld [vmem:[%s170 + $0x3a8] sm:$0xff]
        %v322 = vld [vmem:[%s170 + $0x3b0] sm:$0xff]
        %v323 = vld [vmem:[%s170 + $0x3b8] sm:$0xff]
        %v324 = vld [vmem:[%s170 + $0x3c0] sm:$0xff]
        %v325 = vld [vmem:[%s170 + $0x3c8] sm:$0xff]
        %v326 = vld [vmem:[%s170 + $0x3d0] sm:$0xff]
        %v327 = vld [vmem:[%s170 + $0x3d8] sm:$0xff]
        %v328 = vld [vmem:[%s170 + $0x3e0] sm:$0xff]
        %v329 = vld [vmem:[%s170 + $0x3e8] sm:$0xff]
        %v330 = vld [vmem:[%s170 + $0x3f0] sm:$0xff]
        %v331 = vld [vmem:[%s170 + $0x3f8] sm:$0xff]
        %v332 = vld [vmem:[%s200] sm:$0x3]
        %v334 = vlaneseq
        %v335 = vshrl.u32 %v334, 7
        %v336 = vsub.s32 0, %v335
        %v337 = vrot.slane %v332, %v336
        %v338 = vlaneseq
        %v339 = vshrl.u32 %v338, 7
        %v340 = vsub.s32 1, %v339
        %v341 = vrot.slane %v332, %v340
        %v344 = vadd.f32 %v204, %v337
        %v345 = vadd.f32 %v205, %v341
        %v346 = vadd.f32 %v206, %v337
        %v347 = vadd.f32 %v207, %v341
        %v348 = vadd.f32 %v208, %v337
        %v349 = vadd.f32 %v209, %v341
        %v350 = vadd.f32 %v210, %v337
        %v351 = vadd.f32 %v211, %v341
        %v352 = vadd.f32 %v212, %v337
        %v353 = vadd.f32 %v213, %v341
        %v354 = vadd.f32 %v214, %v337
        %v355 = vadd.f32 %v215, %v341
        %v356 = vadd.f32 %v216, %v337
        %v357 = vadd.f32 %v217, %v341
        %v358 = vadd.f32 %v218, %v337
        %v359 = vadd.f32 %v219, %v341
        %v360 = vadd.f32 %v220, %v337
        %v361 = vadd.f32 %v221, %v341
        %v362 = vadd.f32 %v222, %v337
        %v363 = vadd.f32 %v223, %v341
        %v364 = vadd.f32 %v224, %v337
        %v365 = vadd.f32 %v225, %v341
        %v366 = vadd.f32 %v226, %v337
        %v367 = vadd.f32 %v227, %v341
        %v368 = vadd.f32 %v228, %v337
        %v369 = vadd.f32 %v229, %v341
        %v370 = vadd.f32 %v230, %v337
        %v371 = vadd.f32 %v231, %v341
        %v372 = vadd.f32 %v232, %v337
        %v373 = vadd.f32 %v233, %v341
        %v374 = vadd.f32 %v234, %v337
        %v375 = vadd.f32 %v235, %v341
        %v376 = vadd.f32 %v236, %v337
        %v377 = vadd.f32 %v237, %v341
        %v378 = vadd.f32 %v238, %v337
        %v379 = vadd.f32 %v239, %v341
        %v380 = vadd.f32 %v240, %v337
        %v381 = vadd.f32 %v241, %v341
        %v382 = vadd.f32 %v242, %v337
        %v383 = vadd.f32 %v243, %v341
        %v384 = vadd.f32 %v244, %v337
        %v385 = vadd.f32 %v245, %v341
        %v386 = vadd.f32 %v246, %v337
        %v387 = vadd.f32 %v247, %v341
        %v388 = vadd.f32 %v248, %v337
        %v389 = vadd.f32 %v249, %v341
        %v390 = vadd.f32 %v250, %v337
        %v391 = vadd.f32 %v251, %v341
        %v392 = vadd.f32 %v252, %v337
        %v393 = vadd.f32 %v253, %v341
        %v394 = vadd.f32 %v254, %v337
        %v395 = vadd.f32 %v255, %v341
        %v396 = vadd.f32 %v256, %v337
        %v397 = vadd.f32 %v257, %v341
        %v398 = vadd.f32 %v258, %v337
        %v399 = vadd.f32 %v259, %v341
        %v400 = vadd.f32 %v260, %v337
        %v401 = vadd.f32 %v261, %v341
        %v402 = vadd.f32 %v262, %v337
        %v403 = vadd.f32 %v263, %v341
        %v404 = vadd.f32 %v264, %v337
        %v405 = vadd.f32 %v265, %v341
        %v406 = vadd.f32 %v266, %v337
        %v407 = vadd.f32 %v267, %v341
        %v408 = vadd.f32 %v268, %v337
        %v409 = vadd.f32 %v269, %v341
        %v410 = vadd.f32 %v270, %v337
        %v411 = vadd.f32 %v271, %v341
        %v412 = vadd.f32 %v272, %v337
        %v413 = vadd.f32 %v273, %v341
        %v414 = vadd.f32 %v274, %v337
        %v415 = vadd.f32 %v275, %v341
        %v416 = vadd.f32 %v276, %v337
        %v417 = vadd.f32 %v277, %v341
        %v418 = vadd.f32 %v278, %v337
        %v419 = vadd.f32 %v279, %v341
        %v420 = vadd.f32 %v280, %v337
        %v421 = vadd.f32 %v281, %v341
        %v422 = vadd.f32 %v282, %v337
        %v423 = vadd.f32 %v283, %v341
        %v424 = vadd.f32 %v284, %v337
        %v425 = vadd.f32 %v285, %v341
        %v426 = vadd.f32 %v286, %v337
        %v427 = vadd.f32 %v287, %v341
        %v428 = vadd.f32 %v288, %v337
        %v429 = vadd.f32 %v289, %v341
        %v430 = vadd.f32 %v290, %v337
        %v431 = vadd.f32 %v291, %v341
        %v432 = vadd.f32 %v292, %v337
        %v433 = vadd.f32 %v293, %v341
        %v434 = vadd.f32 %v294, %v337
        %v435 = vadd.f32 %v295, %v341
        %v436 = vadd.f32 %v296, %v337
        %v437 = vadd.f32 %v297, %v341
        %v438 = vadd.f32 %v298, %v337
        %v439 = vadd.f32 %v299, %v341
        %v440 = vadd.f32 %v300, %v337
        %v441 = vadd.f32 %v301, %v341
        %v442 = vadd.f32 %v302, %v337
        %v443 = vadd.f32 %v303, %v341
        %v444 = vadd.f32 %v304, %v337
        %v445 = vadd.f32 %v305, %v341
        %v446 = vadd.f32 %v306, %v337
        %v447 = vadd.f32 %v307, %v341
        %v448 = vadd.f32 %v308, %v337
        %v449 = vadd.f32 %v309, %v341
        %v450 = vadd.f32 %v310, %v337
        %v451 = vadd.f32 %v311, %v341
        %v452 = vadd.f32 %v312, %v337
        %v453 = vadd.f32 %v313, %v341
        %v454 = vadd.f32 %v314, %v337
        %v455 = vadd.f32 %v315, %v341
        %v456 = vadd.f32 %v316, %v337
        %v457 = vadd.f32 %v317, %v341
        %v458 = vadd.f32 %v318, %v337
        %v459 = vadd.f32 %v319, %v341
        %v460 = vadd.f32 %v320, %v337
        %v461 = vadd.f32 %v321, %v341
        %v462 = vadd.f32 %v322, %v337
        %v463 = vadd.f32 %v323, %v341
        %v464 = vadd.f32 %v324, %v337
        %v465 = vadd.f32 %v325, %v341
        %v466 = vadd.f32 %v326, %v337
        %v467 = vadd.f32 %v327, %v341
        %v468 = vadd.f32 %v328, %v337
        %v469 = vadd.f32 %v329, %v341
        %v470 = vadd.f32 %v330, %v337
        %v471 = vadd.f32 %v331, %v341
        %472 = vst [vmem:[%s194] sm:$0xff] %v344
        %473 = vst [vmem:[%s194 + $0x8] sm:$0xff] %v345
        %474 = vst [vmem:[%s194 + $0x10] sm:$0xff] %v346
        %475 = vst [vmem:[%s194 + $0x18] sm:$0xff] %v347
        %476 = vst [vmem:[%s194 + $0x20] sm:$0xff] %v348
        %477 = vst [vmem:[%s194 + $0x28] sm:$0xff] %v349
        %478 = vst [vmem:[%s194 + $0x30] sm:$0xff] %v350
        %479 = vst [vmem:[%s194 + $0x38] sm:$0xff] %v351
        %480 = vst [vmem:[%s194 + $0x40] sm:$0xff] %v352
        %481 = vst [vmem:[%s194 + $0x48] sm:$0xff] %v353
        %482 = vst [vmem:[%s194 + $0x50] sm:$0xff] %v354
        %483 = vst [vmem:[%s194 + $0x58] sm:$0xff] %v355
        %484 = vst [vmem:[%s194 + $0x60] sm:$0xff] %v356
        %485 = vst [vmem:[%s194 + $0x68] sm:$0xff] %v357
        %486 = vst [vmem:[%s194 + $0x70] sm:$0xff] %v358
        %487 = vst [vmem:[%s194 + $0x78] sm:$0xff] %v359
        %488 = vst [vmem:[%s194 + $0x80] sm:$0xff] %v360
        %489 = vst [vmem:[%s194 + $0x88] sm:$0xff] %v361
        %490 = vst [vmem:[%s194 + $0x90] sm:$0xff] %v362
        %491 = vst [vmem:[%s194 + $0x98] sm:$0xff] %v363
        %492 = vst [vmem:[%s194 + $0xa0] sm:$0xff] %v364
        %493 = vst [vmem:[%s194 + $0xa8] sm:$0xff] %v365
        %494 = vst [vmem:[%s194 + $0xb0] sm:$0xff] %v366
        %495 = vst [vmem:[%s194 + $0xb8] sm:$0xff] %v367
        %496 = vst [vmem:[%s194 + $0xc0] sm:$0xff] %v368
        %497 = vst [vmem:[%s194 + $0xc8] sm:$0xff] %v369
        %498 = vst [vmem:[%s194 + $0xd0] sm:$0xff] %v370
        %499 = vst [vmem:[%s194 + $0xd8] sm:$0xff] %v371
        %500 = vst [vmem:[%s194 + $0xe0] sm:$0xff] %v372
        %501 = vst [vmem:[%s194 + $0xe8] sm:$0xff] %v373
        %502 = vst [vmem:[%s194 + $0xf0] sm:$0xff] %v374
        %503 = vst [vmem:[%s194 + $0xf8] sm:$0xff] %v375
        %504 = vst [vmem:[%s194 + $0x100] sm:$0xff] %v376
        %505 = vst [vmem:[%s194 + $0x108] sm:$0xff] %v377
        %506 = vst [vmem:[%s194 + $0x110] sm:$0xff] %v378
        %507 = vst [vmem:[%s194 + $0x118] sm:$0xff] %v379
        %508 = vst [vmem:[%s194 + $0x120] sm:$0xff] %v380
        %509 = vst [vmem:[%s194 + $0x128] sm:$0xff] %v381
        %510 = vst [vmem:[%s194 + $0x130] sm:$0xff] %v382
        %511 = vst [vmem:[%s194 + $0x138] sm:$0xff] %v383
        %512 = vst [vmem:[%s194 + $0x140] sm:$0xff] %v384
        %513 = vst [vmem:[%s194 + $0x148] sm:$0xff] %v385
        %514 = vst [vmem:[%s194 + $0x150] sm:$0xff] %v386
        %515 = vst [vmem:[%s194 + $0x158] sm:$0xff] %v387
        %516 = vst [vmem:[%s194 + $0x160] sm:$0xff] %v388
        %517 = vst [vmem:[%s194 + $0x168] sm:$0xff] %v389
        %518 = vst [vmem:[%s194 + $0x170] sm:$0xff] %v390
        %519 = vst [vmem:[%s194 + $0x178] sm:$0xff] %v391
        %520 = vst [vmem:[%s194 + $0x180] sm:$0xff] %v392
        %521 = vst [vmem:[%s194 + $0x188] sm:$0xff] %v393
        %522 = vst [vmem:[%s194 + $0x190] sm:$0xff] %v394
        %523 = vst [vmem:[%s194 + $0x198] sm:$0xff] %v395
        %524 = vst [vmem:[%s194 + $0x1a0] sm:$0xff] %v396
        %525 = vst [vmem:[%s194 + $0x1a8] sm:$0xff] %v397
        %526 = vst [vmem:[%s194 + $0x1b0] sm:$0xff] %v398
        %527 = vst [vmem:[%s194 + $0x1b8] sm:$0xff] %v399
        %528 = vst [vmem:[%s194 + $0x1c0] sm:$0xff] %v400
        %529 = vst [vmem:[%s194 + $0x1c8] sm:$0xff] %v401
        %530 = vst [vmem:[%s194 + $0x1d0] sm:$0xff] %v402
        %531 = vst [vmem:[%s194 + $0x1d8] sm:$0xff] %v403
        %532 = vst [vmem:[%s194 + $0x1e0] sm:$0xff] %v404
        %533 = vst [vmem:[%s194 + $0x1e8] sm:$0xff] %v405
        %534 = vst [vmem:[%s194 + $0x1f0] sm:$0xff] %v406
        %535 = vst [vmem:[%s194 + $0x1f8] sm:$0xff] %v407
        %536 = vst [vmem:[%s194 + $0x200] sm:$0xff] %v408
        %537 = vst [vmem:[%s194 + $0x208] sm:$0xff] %v409
        %538 = vst [vmem:[%s194 + $0x210] sm:$0xff] %v410
        %539 = vst [vmem:[%s194 + $0x218] sm:$0xff] %v411
        %540 = vst [vmem:[%s194 + $0x220] sm:$0xff] %v412
        %541 = vst [vmem:[%s194 + $0x228] sm:$0xff] %v413
        %542 = vst [vmem:[%s194 + $0x230] sm:$0xff] %v414
        %543 = vst [vmem:[%s194 + $0x238] sm:$0xff] %v415
        %544 = vst [vmem:[%s194 + $0x240] sm:$0xff] %v416
        %545 = vst [vmem:[%s194 + $0x248] sm:$0xff] %v417
        %546 = vst [vmem:[%s194 + $0x250] sm:$0xff] %v418
        %547 = vst [vmem:[%s194 + $0x258] sm:$0xff] %v419
        %548 = vst [vmem:[%s194 + $0x260] sm:$0xff] %v420
        %549 = vst [vmem:[%s194 + $0x268] sm:$0xff] %v421
        %550 = vst [vmem:[%s194 + $0x270] sm:$0xff] %v422
        %551 = vst [vmem:[%s194 + $0x278] sm:$0xff] %v423
        %552 = vst [vmem:[%s194 + $0x280] sm:$0xff] %v424
        %553 = vst [vmem:[%s194 + $0x288] sm:$0xff] %v425
        %554 = vst [vmem:[%s194 + $0x290] sm:$0xff] %v426
        %555 = vst [vmem:[%s194 + $0x298] sm:$0xff] %v427
        %556 = vst [vmem:[%s194 + $0x2a0] sm:$0xff] %v428
        %557 = vst [vmem:[%s194 + $0x2a8] sm:$0xff] %v429
        %558 = vst [vmem:[%s194 + $0x2b0] sm:$0xff] %v430
        %559 = vst [vmem:[%s194 + $0x2b8] sm:$0xff] %v431
        %560 = vst [vmem:[%s194 + $0x2c0] sm:$0xff] %v432
        %561 = vst [vmem:[%s194 + $0x2c8] sm:$0xff] %v433
        %562 = vst [vmem:[%s194 + $0x2d0] sm:$0xff] %v434
        %563 = vst [vmem:[%s194 + $0x2d8] sm:$0xff] %v435
        %564 = vst [vmem:[%s194 + $0x2e0] sm:$0xff] %v436
        %565 = vst [vmem:[%s194 + $0x2e8] sm:$0xff] %v437
        %566 = vst [vmem:[%s194 + $0x2f0] sm:$0xff] %v438
        %567 = vst [vmem:[%s194 + $0x2f8] sm:$0xff] %v439
        %568 = vst [vmem:[%s194 + $0x300] sm:$0xff] %v440
        %569 = vst [vmem:[%s194 + $0x308] sm:$0xff] %v441
        %570 = vst [vmem:[%s194 + $0x310] sm:$0xff] %v442
        %571 = vst [vmem:[%s194 + $0x318] sm:$0xff] %v443
        %572 = vst [vmem:[%s194 + $0x320] sm:$0xff] %v444
        %573 = vst [vmem:[%s194 + $0x328] sm:$0xff] %v445
        %574 = vst [vmem:[%s194 + $0x330] sm:$0xff] %v446
        %575 = vst [vmem:[%s194 + $0x338] sm:$0xff] %v447
        %576 = vst [vmem:[%s194 + $0x340] sm:$0xff] %v448
        %577 = vst [vmem:[%s194 + $0x348] sm:$0xff] %v449
        %578 = vst [vmem:[%s194 + $0x350] sm:$0xff] %v450
        %579 = vst [vmem:[%s194 + $0x358] sm:$0xff] %v451
        %580 = vst [vmem:[%s194 + $0x360] sm:$0xff] %v452
        %581 = vst [vmem:[%s194 + $0x368] sm:$0xff] %v453
        %582 = vst [vmem:[%s194 + $0x370] sm:$0xff] %v454
        %583 = vst [vmem:[%s194 + $0x378] sm:$0xff] %v455
        %584 = vst [vmem:[%s194 + $0x380] sm:$0xff] %v456
        %585 = vst [vmem:[%s194 + $0x388] sm:$0xff] %v457
        %586 = vst [vmem:[%s194 + $0x390] sm:$0xff] %v458
        %587 = vst [vmem:[%s194 + $0x398] sm:$0xff] %v459
        %588 = vst [vmem:[%s194 + $0x3a0] sm:$0xff] %v460
        %589 = vst [vmem:[%s194 + $0x3a8] sm:$0xff] %v461
        %590 = vst [vmem:[%s194 + $0x3b0] sm:$0xff] %v462
        %591 = vst [vmem:[%s194 + $0x3b8] sm:$0xff] %v463
        %592 = vst [vmem:[%s194 + $0x3c0] sm:$0xff] %v464
        %593 = vst [vmem:[%s194 + $0x3c8] sm:$0xff] %v465
        %594 = vst [vmem:[%s194 + $0x3d0] sm:$0xff] %v466
        %595 = vst [vmem:[%s194 + $0x3d8] sm:$0xff] %v467
        %596 = vst [vmem:[%s194 + $0x3e0] sm:$0xff] %v468
        %597 = vst [vmem:[%s194 + $0x3e8] sm:$0xff] %v469
        %598 = vst [vmem:[%s194 + $0x3f0] sm:$0xff] %v470
        %599 = vst [vmem:[%s194 + $0x3f8] sm:$0xff] %v471
        %s600 = sand.u32 %s95, 1
        %s601 = scalar_lea.sflag [#allocation4], %s600
        %s602 = sand.u32 %s95, 1
        %s603 = smul.addr %s602, 1024
        %s604 = scalar_lea.vmem [#allocation5], %s603
        // Predicated region
        $region33: #{causal_bias_add.1} parent=27 // pred_check
          %p605 = pneg %p105
        $region34: #{causal_bias_add.1} parent=27 // pred_check_branch
          %607 = sbr.rel (%p605) target = $region36
        $region35: #{causal_bias_add.1} parent=27 // pred_region
          %s608 = smul.u32 64, %s23
          %s609 = smul.u32 2, %s24
          %s611 = ssub.s32 16384, 16384
          %612 = vsyncadd %s601, %s611
          %s613 = smul.addr %s608, 2
          %s614 = sadd.s32 %s609, %s613
          %s615 = smul.addr %s614, 128
          %s616 = scalar_lea.hbm %s2, %s615
          %s617 = sshll.u32 %s604, 4
          %s618 = int_to_ptr.vmem [resolvable:$true] %s617
          %623 = dma.vmem_to_hbm [thread:$0]  %s618, 16384, %s616, %s601, 256, 256, 16
        $region36: #{causal_bias_add.1} parent=27 // pred_fallthru
          _
      $region28: #{causal_bias_add.1} parent=5 // pred_fallthru
        _
      %p624 = scmp.le.s32.totalorder 2, %s14
      // Predicated region
      $region37: #{causal_bias_add.1} parent=5 // pred_check
        %p625 = pneg %p624
      $region38: #{causal_bias_add.1} parent=5 // pred_check_branch
        %627 = sbr.rel (%p625) target = $region40
      $region39: #{causal_bias_add.1} parent=5 // pred_region
        %s628 = ssub.s32 %s14, 2
        // Predicated region
        $region41: #{causal_bias_add.1} parent=39 // pred_check
          %p629 = pneg %p111
        $region42: #{causal_bias_add.1} parent=39 // pred_check_branch
          %631 = sbr.rel (%p629) target = $region44
        $region43: #{causal_bias_add.1} parent=39 // pred_region
          %s632 = sand.u32 %s96, 1
          %s633 = scalar_lea.sflag [#allocation4], %s632
          %s634 = sand.u32 %s96, 1
          %s635 = smul.addr %s634, 1024
          %s636 = scalar_lea.vmem [#allocation5], %s635
          %637 = dma.done %s633, 16384
        $region44: #{causal_bias_add.1} parent=39 // pred_fallthru
          _
      $region40: #{causal_bias_add.1} parent=5 // pred_fallthru
        _
    $region6: #{causal_bias_add.1} parent=1 // loop_footer
      %s18 = sadd.s32 1, %s14
    $region7: #{causal_bias_add.1} parent=1 // loop_footer_branch
      %13 = sbr.rel target = $region3
    $region8: #{causal_bias_add.1} parent=1 // loop_exit
      _
    %638 = vsyncpa [#allocation3], 1
    %s639 = scalar_lea.sflag [#allocation3], 1
    %640 = vsyncpa %s639, 1
    %641 = vsyncpa [#allocation4], 1
    %s642 = scalar_lea.sflag [#allocation4], 1
    %643 = vsyncpa %s642, 1

</llo_original>
